<compile_context>
chip_gen: v5e
topology: v5e:2x2
jax: 0.10.0
libtpu: 0.0.40
codegen_flags: <defaults>
</compile_context>

<pallas_src>
import functools
import math

import jax
import jax.numpy as jnp
from jax.experimental import pallas as pl
from jax.experimental.pallas import tpu as pltpu


def _instance_norm_kernel(x_ref, y_ref, stats_ref, *, eps: float):
    x = x_ref[...].astype(jnp.float32)                       # (tb, L)
    finite = jnp.logical_not(jnp.isnan(x))

    # Pass 1: count and sum of finite entries (lane reductions on the XLU).
    cnt = jnp.sum(jnp.where(finite, 1.0, 0.0), axis=-1, keepdims=True)  # (tb, 1)
    s1 = jnp.sum(jnp.where(finite, x, 0.0), axis=-1, keepdims=True)     # (tb, 1)
    has_any = cnt > 0.0
    inv_cnt = 1.0 / jnp.where(has_any, cnt, 1.0)              # avoid 0/0
    # nan_to_num(nanmean(x, -1), nan=0.0)
    loc = jnp.where(has_any, s1 * inv_cnt, 0.0)

    # Pass 2: centered second moment (two-pass variance, faithful to torch:
    # nan_to_num(nanmean((x - loc)^2, -1).sqrt(), nan=1.0)).
    xc = x - loc                                              # NaNs stay NaN
    d = jnp.where(finite, xc, 0.0)
    var = jnp.sum(d * d, axis=-1, keepdims=True) * inv_cnt
    scale = jnp.where(has_any, jnp.sqrt(var), 1.0)
    # scale == 0 -> eps (exact-equality check, as in the torch module)
    scale = jnp.where(scale == 0.0, jnp.float32(eps), scale)

    y = xc * (1.0 / scale)                                    # per-row divide, broadcast mul
    y_ref[...] = y.astype(y_ref.dtype)                        # full lane-dense store
    # Fused single store of the per-row statistics slab.
    stats_ref[...] = jnp.concatenate([loc, scale], axis=-1).astype(stats_ref.dtype)


def _round_up(n, m):
    return -(-n // m) * m


def _sublane_multiple(dtype):
    itemsize = jnp.dtype(dtype).itemsize
    return max(8, 32 // max(1, itemsize))   # f32 -> 8, bf16 -> 16, int8/fp8 -> 32


def _choose_tb(B, L, dtype, target_block_bytes, min_grid_steps=4):
    """Pick the batch tile.

    - sized so the f32 working set of one block is ~target_block_bytes,
    - capped so the grid has >= min_grid_steps whenever B is large enough
      (pipelining + megacore sharding),
    - rounded to the dtype's sublane multiple; B is padded up to tb later.
    """
    sub = _sublane_multiple(dtype)
    # Budget against the f32 working set (kernel computes in f32 regardless
    # of the input dtype), so temporaries don't blow past the VMEM limit.
    rows_budget = max(sub, (target_block_bytes // max(1, L * 4)) // sub * sub)
    # Cap so the grid keeps at least min_grid_steps steps when B allows it.
    rows_cap = max(sub, _round_up(pl.cdiv(B, min_grid_steps), sub))
    tb = min(rows_budget, rows_cap)
    tb = min(tb, _round_up(B, sub))          # never bigger than the padded batch
    return tb


def instance_norm(
    x,
    eps=1e-5,
    *,
    tb=None,
    target_block_bytes=4 * 1024 * 1024,
    vmem_limit_bytes=48 * 1024 * 1024,
):
    """Pallas equivalent of InstanceNorm.forward(x) with loc_scale=None.

    Returns (normalized_x, (loc, scale)); loc/scale have shape x.shape[:-1] + (1,).
    """
    orig_shape = x.shape
    L = orig_shape[-1]
    B = math.prod(orig_shape[:-1]) if len(orig_shape) > 1 else 1
    x2 = x.reshape(B, L)

    if tb is None:
        tb = _choose_tb(B, L, x.dtype, target_block_bytes)
    sub = _sublane_multiple(x.dtype)
    assert tb % sub == 0, "batch tile must be a multiple of the sublane packing"

    # Pad the flattened batch so tb never has to divide B exactly.
    B_pad = _round_up(B, tb)
    if B_pad != B:
        x2 = jnp.pad(x2, ((0, B_pad - B), (0, 0)))
    grid = B_pad // tb

    # TODO(synk): for extremely long contexts where even a `sub`-row (sub, L)
    # f32 block overflows VMEM, add a second "arbitrary" grid axis over L with
    # scratch accumulators for (cnt, sum) / second pass and a pl.when finalize.

    kernel = functools.partial(_instance_norm_kernel, eps=eps)
    itemsize = jnp.dtype(x.dtype).itemsize

    cost = pl.CostEstimate(
        flops=10 * B_pad * L,                                   # masked sums + normalize
        transcendentals=2 * B_pad,                              # sqrt + reciprocal per row
        bytes_accessed=2 * B_pad * L * itemsize + 2 * B_pad * 4,  # read x, write y, stats
    )

    y, stats = pl.pallas_call(
        kernel,
        out_shape=(
            jax.ShapeDtypeStruct((B_pad, L), x.dtype),
            jax.ShapeDtypeStruct((B_pad, 2), jnp.float32),
        ),
        grid_spec=pltpu.PrefetchScalarGridSpec(
            num_scalar_prefetch=0,
            grid=(grid,),
            in_specs=[pl.BlockSpec((tb, L), lambda i: (i, 0))],
            out_specs=[
                pl.BlockSpec((tb, L), lambda i: (i, 0)),
                pl.BlockSpec((tb, 2), lambda i: (i, 0)),
            ],
        ),
        compiler_params=pltpu.CompilerParams(
            dimension_semantics=("parallel",),
            vmem_limit_bytes=vmem_limit_bytes,
        ),
        cost_estimate=cost,
    )(x2)

    y = y[:B].reshape(orig_shape)
    loc = stats[:B, 0:1].astype(x.dtype).reshape(orig_shape[:-1] + (1,))
    scale = stats[:B, 1:2].astype(x.dtype).reshape(orig_shape[:-1] + (1,))
    return y, (loc, scale)


def _reference(x, eps=1e-5):
    """Pure-JAX reference mirroring the PyTorch forward (two-pass variance)."""
    mask = ~jnp.isnan(x)
    cnt = jnp.sum(mask, axis=-1, keepdims=True).astype(jnp.float32)
    loc = jnp.where(
        cnt > 0,
        jnp.sum(jnp.where(mask, x, 0.0), axis=-1, keepdims=True)
        / jnp.maximum(cnt, 1.0),
        0.0,
    )
    d2 = jnp.where(mask, (x - loc) ** 2, 0.0)
    scale = jnp.where(
        cnt > 0,
        jnp.sqrt(jnp.sum(d2, axis=-1, keepdims=True) / jnp.maximum(cnt, 1.0)),
        1.0,
    )
    scale = jnp.where(scale == 0.0, eps, scale)
    return (x - loc) / scale, (loc, scale)


def _check(x, y, loc, scale, eps=1e-5):
    y_ref, (loc_ref, scale_ref) = _reference(x, eps=eps)
    finite = ~jnp.isnan(x)
    assert bool(jnp.all(jnp.isnan(y) == ~finite))
    assert jnp.allclose(jnp.where(finite, y, 0.0),
                        jnp.where(finite, y_ref, 0.0), atol=1e-5, rtol=1e-5)
    assert jnp.allclose(loc, loc_ref, atol=1e-5, rtol=1e-5)
    assert jnp.allclose(scale, scale_ref, atol=1e-5, rtol=1e-5)


if __name__ == "__main__":
    key = jax.random.PRNGKey(0)

    # Case 1: small [batch, seq] input with NaN padding and degenerate rows.
    B, L = 16, 256
    x = jax.random.normal(key, (B, L), dtype=jnp.float32) * 3.0 + 1.5
    x = x.at[0, :32].set(jnp.nan)
    x = x.at[3, 100:].set(jnp.nan)
    x = x.at[5, :].set(jnp.nan)      # all-NaN row -> loc=0, scale=1
    x = x.at[7, :].set(2.0)          # constant row -> scale==0 -> eps
    y, (loc, scale) = instance_norm(x, eps=1e-5)
    jax.block_until_ready((y, loc, scale))
    _check(x, y, loc, scale)

    # Case 2: awkward batch that does NOT divide by the tile (exercises the
    # padding path) plus a small block budget to force a multi-step grid.
    B2, L2 = 40, 512
    x2 = jax.random.normal(jax.random.PRNGKey(1), (B2, L2), dtype=jnp.float32)
    x2 = x2.at[1, 200:].set(jnp.nan)
    y2, (loc2, scale2) = instance_norm(x2, eps=1e-5, target_block_bytes=32 * 1024)
    jax.block_until_ready((y2, loc2, scale2))
    _check(x2, y2, loc2, scale2)

    # Case 3: higher-rank input (leading dims flattened inside the wrapper).
    x3 = jax.random.normal(jax.random.PRNGKey(2), (2, 5, 64), dtype=jnp.float32)
    y3, (loc3, scale3) = instance_norm(x3, eps=1e-5)
    jax.block_until_ready((y3, loc3, scale3))
    assert y3.shape == (2, 5, 64) and loc3.shape == (2, 5, 1) and scale3.shape == (2, 5, 1)
    _check(x3, y3, loc3, scale3)

    print("KERNEL_OK")
</pallas_src>

<mosaic_0001>
module attributes {stable_mosaic.version = 11 : i64} {
  func.func @_instance_norm_kernel(%arg0: i32, %arg1: memref<8x256xf32, #tpu.memory_space<vmem>>, %arg2: memref<8x256xf32, #tpu.memory_space<vmem>>, %arg3: memref<8x2xf32, #tpu.memory_space<vmem>>) attributes {dimension_semantics = [#tpu.dimension_semantics<parallel>], iteration_bounds = array<i64: 2>, scalar_prefetch = 0 : i64, scratch_operands = 0 : i64, tpu.core_type = #tpu.core_type<tc>, window_params = [{transform_indices = @transform_0, window_bounds = array<i64: 8, 256>}, {transform_indices = @transform_1, window_bounds = array<i64: 8, 256>}, {transform_indices = @transform_2, window_bounds = array<i64: 8, 2>}]} {
    %c0 = arith.constant 0 : index
    %c0_0 = arith.constant 0 : index
    %0 = vector.load %arg1[%c0, %c0_0] : memref<8x256xf32, #tpu.memory_space<vmem>>, vector<8x256xf32>
    %1 = arith.cmpf one, %0, %0 : vector<8x256xf32>
    %cst = arith.constant dense<true> : vector<8x256xi1>
    %2 = arith.xori %1, %cst : vector<8x256xi1>
    %cst_1 = arith.constant 1.000000e+00 : f32
    %cst_2 = arith.constant 0.000000e+00 : f32
    %3 = vector.broadcast %cst_1 : f32 to vector<8x256xf32>
    %4 = vector.broadcast %cst_2 : f32 to vector<8x256xf32>
    %5 = arith.select %2, %3, %4 : vector<8x256xi1>, vector<8x256xf32>
    %cst_3 = arith.constant dense<0.000000e+00> : vector<8xf32>
    %6 = vector.multi_reduction <add>, %5, %cst_3 [1] : vector<8x256xf32> to vector<8xf32>
    %7 = vector.shape_cast %6 : vector<8xf32> to vector<8x1xf32>
    %cst_4 = arith.constant 0.000000e+00 : f32
    %8 = vector.broadcast %cst_4 : f32 to vector<8x256xf32>
    %9 = arith.select %2, %0, %8 : vector<8x256xi1>, vector<8x256xf32>
    %cst_5 = arith.constant dense<0.000000e+00> : vector<8xf32>
    %10 = vector.multi_reduction <add>, %9, %cst_5 [1] : vector<8x256xf32> to vector<8xf32>
    %11 = vector.shape_cast %10 : vector<8xf32> to vector<8x1xf32>
    %cst_6 = arith.constant 0.000000e+00 : f32
    %12 = vector.broadcast %cst_6 : f32 to vector<8x1xf32>
    %13 = arith.cmpf ogt, %7, %12 : vector<8x1xf32>
    %cst_7 = arith.constant 1.000000e+00 : f32
    %14 = vector.broadcast %cst_7 : f32 to vector<8x1xf32>
    %15 = arith.select %13, %7, %14 : vector<8x1xi1>, vector<8x1xf32>
    %cst_8 = arith.constant 1.000000e+00 : f32
    %16 = vector.broadcast %cst_8 : f32 to vector<8x1xf32>
    %17 = arith.divf %16, %15 : vector<8x1xf32>
    %18 = arith.mulf %11, %17 : vector<8x1xf32>
    %cst_9 = arith.constant 0.000000e+00 : f32
    %19 = vector.broadcast %cst_9 : f32 to vector<8x1xf32>
    %20 = arith.select %13, %18, %19 : vector<8x1xi1>, vector<8x1xf32>
    %21 = vector.broadcast %20 : vector<8x1xf32> to vector<8x256xf32>
    %22 = arith.subf %0, %21 : vector<8x256xf32>
    %cst_10 = arith.constant 0.000000e+00 : f32
    %23 = vector.broadcast %cst_10 : f32 to vector<8x256xf32>
    %24 = arith.select %2, %22, %23 : vector<8x256xi1>, vector<8x256xf32>
    %25 = arith.mulf %24, %24 : vector<8x256xf32>
    %cst_11 = arith.constant dense<0.000000e+00> : vector<8xf32>
    %26 = vector.multi_reduction <add>, %25, %cst_11 [1] : vector<8x256xf32> to vector<8xf32>
    %27 = vector.shape_cast %26 : vector<8xf32> to vector<8x1xf32>
    %28 = arith.mulf %27, %17 : vector<8x1xf32>
    %29 = math.sqrt %28 : vector<8x1xf32>
    %cst_12 = arith.constant 1.000000e+00 : f32
    %30 = vector.broadcast %cst_12 : f32 to vector<8x1xf32>
    %31 = arith.select %13, %29, %30 : vector<8x1xi1>, vector<8x1xf32>
    %cst_13 = arith.constant 0.000000e+00 : f32
    %32 = vector.broadcast %cst_13 : f32 to vector<8x1xf32>
    %33 = arith.cmpf oeq, %31, %32 : vector<8x1xf32>
    %cst_14 = arith.constant 9.99999974E-6 : f32
    %34 = vector.broadcast %cst_14 : f32 to vector<8x1xf32>
    %35 = arith.select %33, %34, %31 : vector<8x1xi1>, vector<8x1xf32>
    %cst_15 = arith.constant 1.000000e+00 : f32
    %36 = vector.broadcast %cst_15 : f32 to vector<8x1xf32>
    %37 = arith.divf %36, %35 : vector<8x1xf32>
    %38 = vector.broadcast %37 : vector<8x1xf32> to vector<8x256xf32>
    %39 = arith.mulf %22, %38 : vector<8x256xf32>
    %c0_16 = arith.constant 0 : index
    %c0_17 = arith.constant 0 : index
    %40 = vector.load %arg2[%c0_16, %c0_17] : memref<8x256xf32, #tpu.memory_space<vmem>>, vector<8x256xf32>
    tpu.vector_store %arg2[%c0_16, %c0_17], %39 {strides = array<i32>} : memref<8x256xf32, #tpu.memory_space<vmem>>, vector<8x256xf32>,
    %41 = tpu.concatenate %20, %35 in 1 : vector<8x1xf32>, vector<8x1xf32> -> vector<8x2xf32>
    %c0_18 = arith.constant 0 : index
    %c0_19 = arith.constant 0 : index
    %42 = vector.load %arg3[%c0_18, %c0_19] : memref<8x2xf32, #tpu.memory_space<vmem>>, vector<8x2xf32>
    tpu.vector_store %arg3[%c0_18, %c0_19], %41 {strides = array<i32>} : memref<8x2xf32, #tpu.memory_space<vmem>>, vector<8x2xf32>,
    return
  }
  func.func @transform_0(%arg0: i32) -> (i32, i32) {
    %c0_i32 = arith.constant 0 : i32
    %c0_i32_0 = arith.constant 0 : i32
    return %arg0, %c0_i32 : i32, i32
  }
  func.func @transform_1(%arg0: i32) -> (i32, i32) {
    %c0_i32 = arith.constant 0 : i32
    %c0_i32_0 = arith.constant 0 : i32
    return %arg0, %c0_i32 : i32, i32
  }
  func.func @transform_2(%arg0: i32) -> (i32, i32) {
    %c0_i32 = arith.constant 0 : i32
    %c0_i32_0 = arith.constant 0 : i32
    return %arg0, %c0_i32 : i32, i32
  }
}

</mosaic_0001>

<llo_original>
// kernel: tpu_custom_call.1
$region0: #{tpu_custom_call.1}
  #allocation0 [shape = 'u32[]', space=smem, size = 0x4, offset = 0x4, fixed_abs, tag = 'smem constant byte address 0x4 - core index']
  #allocation1 [shape = 'u32[72,128]{1,0:T(1,128)}', space=vmem, size = 0x9000, scoped, tag = 'internal scratch']
  %s0 = inlined_call_operand.hbm [shape: f32[16,256], index: 0, kind: input, shape index: {}]
  %s1 = inlined_call_operand.hbm [shape: f32[16,256], index: 1, kind: output, shape index: {0}]
  %s2 = inlined_call_operand.vmem [shape: f32[16,2], index: 2, kind: output, shape index: {1}]
  %3 = xla_tuple %s1, %s2
  %s4 = sld [smem:[#allocation0]]
  $region49: #{tpu_custom_call.1} parent=0
    _
  %s6 = ssub.s32 1, %s4
  %s7 = scalar_select 0, %s6, %s4
  $region1: #{tpu_custom_call.1} parent=0
    #allocation2 [shape = 'u8[16384]{0}', space=vmem, size = 0x4000, scoped, tag = 'input window, operand 0']
    #allocation3 [shape = 's32[2]{0}', space=sflag, size = 0x8, scoped, tag = 'scoped memory for tpu_custom_call.1']
    #allocation4 [shape = 's32[2]{0}', space=sflag, size = 0x8, scoped, tag = 'scoped memory for tpu_custom_call.1']
    #allocation5 [shape = 'u8[16384]{0}', space=vmem, size = 0x4000, scoped, tag = 'output window, operand 0']
    %8 = vsyncpa [#allocation3], 0
    %s9 = scalar_lea.sflag [#allocation3], 1
    %10 = vsyncpa %s9, 0
    %11 = vsyncpa [#allocation4], 0
    %s12 = scalar_lea.sflag [#allocation4], 1
    %13 = vsyncpa %s12, 0
    loop: start=0, step=1, limit=4
    $region2: #{tpu_custom_call.1} parent=1 // loop_pre_header
      _
    $region3: #{tpu_custom_call.1} parent=1 // loop_header
      %s15 = sphi 0, %s19
      %p16 = scmp.ge.s32.totalorder %s15, 4
      %s25 = sphi 0, %s27
      %s28 = sphi 0, %s25
      %s29 = sphi 0, %s28
      %s45 = sphi 0, %s29
      %s51 = sphi 0, %s53
      %s54 = sphi 0, %s51
      %s55 = sphi 0, %s54
      %s71 = sphi 0, %s55
      %s77 = sphi 0, %s79
      %s80 = sphi 0, %s77
      %s81 = sphi 0, %s80
      %s97 = sphi 0, %s81
    $region4: #{tpu_custom_call.1} parent=1 // loop_header_branch
      %18 = sbr.rel (%p16) target = $region8
    $region5: #{tpu_custom_call.1} parent=1 // loop_body
      %s20 = ssub.s32 %s15, 1
      %s21 = ssub.s32 %s15, 2
      %s22 = sadd.s32 %s15, 1
      %s23 = ssub.s32 %s15, %s22
      %p24 = scmp.eq.s32.totalorder %s23, 0
      %s26 = sadd.s32 %s25, 1
      %s27 = scalar_select %p24, %s25, %s26
      %p30 = pneg %p24
      %p31 = scmp.eq.s32.totalorder %s15, 1
      %p32 = por %p30, %p31
      %p33 = scmp.ne.s32.totalorder %s25, %s28
      %p34 = scmp.eq.s32.totalorder %s15, 0
      %p35 = por %p33, %p34
      %p36 = scmp.ne.s32.totalorder %s25, %s28
      %p37 = scmp.eq.s32.totalorder %s20, 1
      %p38 = por %p36, %p37
      %p39 = scmp.ne.s32.totalorder %s28, %s29
      %p40 = scmp.eq.s32.totalorder %s20, 0
      %p41 = por %p39, %p40
      %p42 = scmp.ne.s32.totalorder %s28, %s29
      %p43 = scmp.eq.s32.totalorder %s21, 1
      %p44 = por %p42, %p43
      %p46 = scmp.ne.s32.totalorder %s29, %s45
      %p47 = scmp.eq.s32.totalorder %s21, 0
      %p48 = por %p46, %p47
      %s49 = ssub.s32 %s15, %s22
      %p50 = scmp.eq.s32.totalorder %s49, 0
      %s52 = sadd.s32 %s51, 1
      %s53 = scalar_select %p50, %s51, %s52
      %p56 = pneg %p50
      %p57 = scmp.eq.s32.totalorder %s15, 1
      %p58 = por %p56, %p57
      %p59 = scmp.ne.s32.totalorder %s51, %s54
      %p60 = scmp.eq.s32.totalorder %s15, 0
      %p61 = por %p59, %p60
      %p62 = scmp.ne.s32.totalorder %s51, %s54
      %p63 = scmp.eq.s32.totalorder %s20, 1
      %p64 = por %p62, %p63
      %p65 = scmp.ne.s32.totalorder %s54, %s55
      %p66 = scmp.eq.s32.totalorder %s20, 0
      %p67 = por %p65, %p66
      %p68 = scmp.ne.s32.totalorder %s54, %s55
      %p69 = scmp.eq.s32.totalorder %s21, 1
      %p70 = por %p68, %p69
      %p72 = scmp.ne.s32.totalorder %s55, %s71
      %p73 = scmp.eq.s32.totalorder %s21, 0
      %p74 = por %p72, %p73
      %s75 = ssub.s32 %s15, %s22
      %p76 = scmp.eq.s32.totalorder %s75, 0
      %s78 = sadd.s32 %s77, 1
      %s79 = scalar_select %p76, %s77, %s78
      %p82 = pneg %p76
      %p83 = scmp.eq.s32.totalorder %s15, 1
      %p84 = por %p82, %p83
      %p85 = scmp.ne.s32.totalorder %s77, %s80
      %p86 = scmp.eq.s32.totalorder %s15, 0
      %p87 = por %p85, %p86
      %p88 = scmp.ne.s32.totalorder %s77, %s80
      %p89 = scmp.eq.s32.totalorder %s20, 1
      %p90 = por %p88, %p89
      %p91 = scmp.ne.s32.totalorder %s80, %s81
      %p92 = scmp.eq.s32.totalorder %s20, 0
      %p93 = por %p91, %p92
      %p94 = scmp.ne.s32.totalorder %s80, %s81
      %p95 = scmp.eq.s32.totalorder %s21, 1
      %p96 = por %p94, %p95
      %p98 = scmp.ne.s32.totalorder %s81, %s97
      %p99 = scmp.eq.s32.totalorder %s21, 0
      %p100 = por %p98, %p99
      %p101 = scmp.le.s32.totalorder 1, %s15
      %p102 = scmp.lt.s32.totalorder %s15, 3
      %p103 = pnand %p101, %p102
      %p104 = pneg %p103
      // Predicated region
      $region9: #{tpu_custom_call.1} parent=5 // pred_check
        _
      $region10: #{tpu_custom_call.1} parent=5 // pred_check_branch
        %106 = sbr.rel (%p103) target = $region12
      $region11: #{tpu_custom_call.1} parent=5 // pred_region
        %s107 = ssub.s32 %s15, 1
      $region12: #{tpu_custom_call.1} parent=5 // pred_fallthru
        _
      %p108 = scmp.lt.s32.totalorder %s15, 2
      // Predicated region
      $region13: #{tpu_custom_call.1} parent=5 // pred_check
        %p109 = pneg %p108
      $region14: #{tpu_custom_call.1} parent=5 // pred_check_branch
        %111 = sbr.rel (%p109) target = $region16
      $region15: #{tpu_custom_call.1} parent=5 // pred_region
        // Predicated region
        $region17: #{tpu_custom_call.1} parent=15 // pred_check
          %p112 = pneg %p35
        $region18: #{tpu_custom_call.1} parent=15 // pred_check_branch
          %114 = sbr.rel (%p112) target = $region20
        $region19: #{tpu_custom_call.1} parent=15 // pred_region
          %s115 = sand.u32 %s25, 1
          %s116 = scalar_lea.sflag [#allocation3], %s115
          %s117 = sand.u32 %s25, 1
          %s118 = smul.addr %s117, 16
          %s119 = scalar_lea.vmem [#allocation2], %s118
          %121 = vsyncadd %s116, 0
          %s122 = smul.addr %s15, 2
          %s123 = smul.addr %s122, 8
          %s124 = scalar_lea.hbm %s0, %s123
          %s126 = sshll.u32 %s124, 4
          %s127 = int_to_ptr.hbm [resolvable:$true] %s126
          %s128 = sshll.u32 %s119, 4
          %s129 = int_to_ptr.vmem [resolvable:$true] %s128
          %131 = dma.hbm_to_vmem [thread:$0]  %s127, 256, %s129, %s116
        $region20: #{tpu_custom_call.1} parent=15 // pred_fallthru
          _
      $region16: #{tpu_custom_call.1} parent=5 // pred_fallthru
        _
      %p132 = scmp.le.s32.totalorder 1, %s15
      %p133 = scmp.lt.s32.totalorder %s15, 3
      %p134 = pnand %p132, %p133
      %p135 = pneg %p134
      // Predicated region
      $region21: #{tpu_custom_call.1} parent=5 // pred_check
        _
      $region22: #{tpu_custom_call.1} parent=5 // pred_check_branch
        %137 = sbr.rel (%p134) target = $region24
      $region23: #{tpu_custom_call.1} parent=5 // pred_region
        %s138 = ssub.s32 %s15, 1
        %s139 = sand.u32 %s28, 1
        %s140 = scalar_lea.sflag [#allocation3], %s139
        %s141 = sand.u32 %s28, 1
        %s142 = smul.addr %s141, 16
        %s143 = scalar_lea.vmem [#allocation2], %s142
        // Predicated region
        $region25: #{tpu_custom_call.1} parent=23 // pred_check
          %p144 = pneg %p41
        $region26: #{tpu_custom_call.1} parent=23 // pred_check_branch
          %146 = sbr.rel (%p144) target = $region28
        $region27: #{tpu_custom_call.1} parent=23 // pred_region
          %148 = dma.done %s140, 256
        $region28: #{tpu_custom_call.1} parent=23 // pred_fallthru
          _
        %s149 = sand.u32 %s28, 1
        %s150 = scalar_lea.sflag [#allocation3], %s149
        %s151 = sand.u32 %s28, 1
        %s152 = smul.addr %s151, 16
        %s153 = scalar_lea.vmem [#allocation2], %s152
        %p154 = pneg %p41
        %p155 = pneg %p38
        %p156 = pneg %p67
        %p157 = pneg %p64
        %s158 = sand.u32 %s54, 1
        %s159 = scalar_lea.sflag [#allocation4], %s158
        %s160 = sand.u32 %s54, 1
        %s161 = smul.addr %s160, 16
        %s162 = scalar_lea.vmem [#allocation5], %s161
        %p163 = pneg %p93
        %p164 = pneg %p90
        %p165 = scmp.lt.s32.totalorder %s20, 1
        %s166 = scalar_select %p165, %s20, 1
        %s167 = smul.addr %s166, 8
        %s168 = scalar_lea.vmem %s2, %s167
        %p169 = scmp.lt.s32.totalorder %s20, 1
        %s170 = scalar_select %p169, %s20, 1
        %s171 = smul.addr %s170, 8
        %s172 = scalar_lea.vmem %s2, %s171
        %v173 = vld [vmem:[%s143] sm:$0xff]
        %v174 = vld [vmem:[%s143 + $0x8] sm:$0xff]
        %vm175 = vcmp.ne.f32.partialorder %v173, %v173
        %vm176 = vcmp.ne.f32.partialorder %v174, %v174
        %vm177 = vmxor %vm175, 1
        %vm178 = vmxor %vm176, 1
        %v179 = vsel %vm177, 1.0, 0.0
        %v180 = vsel %vm178, 1.0, 0.0
        %v181 = vadd.f32 %v179, %v180
        %182 = vadd.xlane.f32.xlu0 %v181
        %v183 = vpop.xlane.xlu0 %182
        %v184 = vsel %vm177, %v173, 0.0
        %v185 = vsel %vm178, %v174, 0.0
        %v186 = vadd.f32 %v184, %v185
        %187 = vadd.xlane.f32.xlu0 %v186
        %v188 = vpop.xlane.xlu0 %187
        %vm189 = vcmp.gt.f32.partialorder %v183, 0.0
        %v190 = vsel %vm189, %v183, 1.0
        %v191 = vrcp.pop %v190
        %v192 = vmul.f32 %v190, %v191
        %v193 = vsub.f32 1.0, %v192
        %v194 = vmul.f32 %v191, %v193
        %v195 = vadd.f32 %v191, %v194
        %vm196 = vweird.f32 %v190
        %vm197 = vweird.f32 %v191
        %vm198 = vmor %vm196, %vm197
        %v199 = vsel %vm198, %v191, %v195
        %v200 = vand.u32 2147483647, %v190
        %vm201 = vcmp.eq.f32.partialorder %v200, 8.507059e+37
        %v202 = vand.u32 %v190, 2147483648
        %v203 = vor.u32 1.1754944e-38, %v202
        %v204 = vsel %vm201, %v203, %v199
        %v205 = vmul.f32 1.0, %v204
        %v206 = vmul.f32 %v188, %v205
        %v207 = vsel %vm189, %v206, 0.0
        %v208 = vsub.f32 %v173, %v207
        %v209 = vsub.f32 %v174, %v207
        %v210 = vsel %vm177, %v208, 0.0
        %v211 = vsel %vm178, %v209, 0.0
        %v212 = vmul.f32 %v210, %v210
        %v213 = vmul.f32 %v211, %v211
        %v214 = vadd.f32 %v212, %v213
        %215 = vadd.xlane.f32.xlu0 %v214
        %v216 = vpop.xlane.xlu0 %215
        %v217 = vmul.f32 %v216, %v205
        %v218 = vrsqrt.pop %v217
        %v219 = vmul.f32 %v218, %v217
        %v220 = vmul.f32 %v219, %v218
        %v221 = vmul.f32 0.5, %v220
        %v222 = vsub.f32 1.5, %v221
        %v223 = vmul.f32 %v218, %v222
        %v224 = vmul.f32 %v217, %v223
        %vm225 = vcmp.eq.f32.partialorder %v217, inf
        %v226 = vsel %vm225, %v217, %v224
        %vm227 = vcmp.eq.f32.partialorder %v217, 0.0
        %v228 = vand.u32 %v217, 2147483648
        %v229 = vsel %vm227, %v228, %v226
        %v230 = vsel %vm189, %v229, 1.0
        %vm231 = vcmp.eq.f32.partialorder %v230, 0.0
        %v232 = vsel %vm231, 1e-05, %v230
        %v233 = vrcp.pop %v232
        %v234 = vmul.f32 %v232, %v233
        %v235 = vsub.f32 1.0, %v234
        %v236 = vmul.f32 %v233, %v235
        %v237 = vadd.f32 %v233, %v236
        %vm238 = vweird.f32 %v232
        %vm239 = vweird.f32 %v233
        %vm240 = vmor %vm238, %vm239
        %v241 = vsel %vm240, %v233, %v237
        %v242 = vand.u32 2147483647, %v232
        %vm243 = vcmp.eq.f32.partialorder %v242, 8.507059e+37
        %v244 = vand.u32 %v232, 2147483648
        %v245 = vor.u32 1.1754944e-38, %v244
        %v246 = vsel %vm243, %v245, %v241
        %v247 = vmul.f32 1.0, %v246
        %v248 = vmul.f32 %v208, %v247
        %v249 = vmul.f32 %v209, %v247
        %250 = vst [vmem:[%s162] sm:$0xff] %v248
        %251 = vst [vmem:[%s162 + $0x8] sm:$0xff] %v249
        %vm252 = vcmask 7168
        %v253 = vsel %vm252, %v207, %v232
        %vm254 = vcmask 15360
        %255 = vst.msk [vmem:[%s172] sm:$0xff] %vm254, %v253
        %s256 = sand.u32 %s54, 1
        %s257 = scalar_lea.sflag [#allocation4], %s256
        %s258 = sand.u32 %s54, 1
        %s259 = smul.addr %s258, 16
        %s260 = scalar_lea.vmem [#allocation5], %s259
        %p261 = scmp.lt.s32.totalorder %s20, 1
        %s262 = scalar_select %p261, %s20, 1
        %s263 = smul.addr %s262, 8
        %s264 = scalar_lea.vmem %s2, %s263
        // Predicated region
        $region29: #{tpu_custom_call.1} parent=23 // pred_check
          %p265 = pneg %p64
        $region30: #{tpu_custom_call.1} parent=23 // pred_check_branch
          %267 = sbr.rel (%p265) target = $region32
        $region31: #{tpu_custom_call.1} parent=23 // pred_region
          %269 = vsyncadd %s257, 0
          %s270 = smul.addr %s20, 2
          %s271 = smul.addr %s270, 8
          %s272 = scalar_lea.hbm %s1, %s271
          %s274 = sshll.u32 %s260, 4
          %s275 = int_to_ptr.vmem [resolvable:$true] %s274
          %s276 = sshll.u32 %s272, 4
          %s277 = int_to_ptr.hbm [resolvable:$true] %s276
          %279 = dma.vmem_to_hbm [thread:$0]  %s275, 256, %s277, %s257
        $region32: #{tpu_custom_call.1} parent=23 // pred_fallthru
          _
        // Predicated region
        $region33: #{tpu_custom_call.1} parent=23 // pred_check
          %p280 = pneg %p90
        $region34: #{tpu_custom_call.1} parent=23 // pred_check_branch
          %282 = sbr.rel (%p280) target = $region36
        $region35: #{tpu_custom_call.1} parent=23 // pred_region
          _
        $region36: #{tpu_custom_call.1} parent=23 // pred_fallthru
          _
      $region24: #{tpu_custom_call.1} parent=5 // pred_fallthru
        _
      %p283 = scmp.le.s32.totalorder 2, %s15
      // Predicated region
      $region37: #{tpu_custom_call.1} parent=5 // pred_check
        %p284 = pneg %p283
      $region38: #{tpu_custom_call.1} parent=5 // pred_check_branch
        %286 = sbr.rel (%p284) target = $region40
      $region39: #{tpu_custom_call.1} parent=5 // pred_region
        %s287 = ssub.s32 %s15, 2
        // Predicated region
        $region41: #{tpu_custom_call.1} parent=39 // pred_check
          %p288 = pneg %p70
        $region42: #{tpu_custom_call.1} parent=39 // pred_check_branch
          %290 = sbr.rel (%p288) target = $region44
        $region43: #{tpu_custom_call.1} parent=39 // pred_region
          %s291 = sand.u32 %s55, 1
          %s292 = scalar_lea.sflag [#allocation4], %s291
          %s293 = sand.u32 %s55, 1
          %s294 = smul.addr %s293, 16
          %s295 = scalar_lea.vmem [#allocation5], %s294
          %297 = dma.done %s292, 256
        $region44: #{tpu_custom_call.1} parent=39 // pred_fallthru
          _
        // Predicated region
        $region45: #{tpu_custom_call.1} parent=39 // pred_check
          %p298 = pneg %p96
        $region46: #{tpu_custom_call.1} parent=39 // pred_check_branch
          %300 = sbr.rel (%p298) target = $region48
        $region47: #{tpu_custom_call.1} parent=39 // pred_region
          %p301 = scmp.lt.s32.totalorder %s21, 1
          %s302 = scalar_select %p301, %s21, 1
          %s303 = smul.addr %s302, 8
          %s304 = scalar_lea.vmem %s2, %s303
        $region48: #{tpu_custom_call.1} parent=39 // pred_fallthru
          _
      $region40: #{tpu_custom_call.1} parent=5 // pred_fallthru
        _
    $region6: #{tpu_custom_call.1} parent=1 // loop_footer
      %s19 = sadd.s32 1, %s15
    $region7: #{tpu_custom_call.1} parent=1 // loop_footer_branch
      %14 = sbr.rel target = $region3
    $region8: #{tpu_custom_call.1} parent=1 // loop_exit
      _
    %305 = vsyncpa [#allocation3], 1
    %s306 = scalar_lea.sflag [#allocation3], 1
    %307 = vsyncpa %s306, 1
    %308 = vsyncpa [#allocation4], 1
    %s309 = scalar_lea.sflag [#allocation4], 1
    %310 = vsyncpa %s309, 1

</llo_original>
